<compile_context>
chip_gen: v7x
topology: tpu7x:2x2x1
jax: 0.10.0
libtpu: 0.0.40
codegen_flags: <defaults>
</compile_context>

<pallas_src>
import jax
import jax.numpy as jnp
from jax.experimental import pallas as pl
from jax.experimental.pallas import tpu as pltpu

_LANE = 128


def _round_up(x, m):
    return ((x + m - 1) // m) * m


def _dice_kernel(pred_ref, targ_ref, num_out_ref, den_out_ref,
                 num_acc, den_acc):
    k = pl.program_id(1)

    @pl.when(k == 0)
    def _():
        num_acc[...] = jnp.zeros_like(num_acc)
        den_acc[...] = jnp.zeros_like(den_acc)

    p = pred_ref[...].astype(jnp.float32)
    t = targ_ref[...].astype(jnp.float32)

    # Pure element-wise accumulation (VPU); no per-step cross-lane reduce.
    num_acc[...] += p * t
    den_acc[...] += p + t          # merged sum(predict) + sum(target)

    @pl.when(k == pl.num_programs(1) - 1)
    def _():
        # One sublane (XLU) reduce per batch row, only at the very end.
        num_out_ref[...] = jnp.sum(num_acc[...], axis=0, keepdims=True)
        den_out_ref[...] = jnp.sum(den_acc[...], axis=0, keepdims=True)


def binary_dice_loss(predict, target, *, smooth=1.0,
                     max_block_rows=2048,
                     vmem_limit_bytes=32 * 1024 * 1024,
                     use_bf16=True):
    """BinaryDiceLoss(smooth, reduction='mean').forward as a Pallas kernel.

    predict, target: (B, C, H, W) arrays (any float dtype). Returns f32 scalar.
    NOTE: if every row has target[:, 0] == -1 the result is NaN/Inf, exactly
    like the PyTorch reference.
    """
    assert predict.shape[0] == target.shape[0], "batch size mismatch"
    B = predict.shape[0]
    pred2 = predict.reshape(B, -1)
    targ2 = target.reshape(B, -1)
    N = pred2.shape[1]

    # Row mask uses the original (un-cast, un-padded) target[:, 0].
    t0 = targ2[:, 0].astype(jnp.float32)

    if use_bf16:
        # Halve HBM traffic; accumulation stays f32 inside the kernel.
        pred2 = pred2.astype(jnp.bfloat16)
        targ2 = targ2.astype(jnp.bfloat16)
    in_bytes = 2 if use_bf16 else 4
    sub = 16 if use_bf16 else 8          # sublane packing granularity

    # Lane-dense layout: each flattened row -> (rows, 128).
    rows = -(-N // _LANE)

    # Block rows: multiple of the sublane pack, as large as the budget allows.
    tile_rows = _round_up(min(_round_up(rows, sub), max_block_rows), sub)

    def _block_bytes(tr):
        # 2 inputs x 2 pipeline buffers + 2 f32 accumulators.
        return 2 * 2 * tr * _LANE * in_bytes + 2 * tr * _LANE * 4

    while tile_rows > sub and _block_bytes(tile_rows) > vmem_limit_bytes // 2:
        tile_rows = _round_up(max(tile_rows // 2, sub), sub)

    rows_pad = _round_up(rows, tile_rows)
    n_pad = rows_pad * _LANE

    # Zero-pad the tail of the feature axis: zeros contribute nothing to the
    # sums and padding is at the end, so column 0 (mask) is untouched.  When
    # N is already aligned the pad is a no-op and the reshape is free; with
    # the bf16 cast XLA fuses cast+pad+reshape into a single copy.
    pred3 = jnp.pad(pred2, ((0, 0), (0, n_pad - N))).reshape(B, rows_pad, _LANE)
    targ3 = jnp.pad(targ2, ((0, 0), (0, n_pad - N))).reshape(B, rows_pad, _LANE)

    grid = (B, rows_pad // tile_rows)

    num_part, den_part = pl.pallas_call(
        _dice_kernel,
        out_shape=(jax.ShapeDtypeStruct((B, 1, _LANE), jnp.float32),
                   jax.ShapeDtypeStruct((B, 1, _LANE), jnp.float32)),
        grid_spec=pltpu.PrefetchScalarGridSpec(
            num_scalar_prefetch=0,
            grid=grid,
            in_specs=[
                pl.BlockSpec((None, tile_rows, _LANE), lambda b, k: (b, k, 0)),
                pl.BlockSpec((None, tile_rows, _LANE), lambda b, k: (b, k, 0)),
            ],
            out_specs=(
                pl.BlockSpec((None, 1, _LANE), lambda b, k: (b, 0, 0)),
                pl.BlockSpec((None, 1, _LANE), lambda b, k: (b, 0, 0)),
            ),
            scratch_shapes=[
                pltpu.VMEM((tile_rows, _LANE), jnp.float32),  # sum(p*t) lanes
                pltpu.VMEM((tile_rows, _LANE), jnp.float32),  # sum(p+t) lanes
            ],
        ),
        compiler_params=pltpu.CompilerParams(
            dimension_semantics=("parallel", "arbitrary"),
            vmem_limit_bytes=vmem_limit_bytes),
    )(pred3, targ3)

    # Tiny JAX epilogue: finish the lane reduce and the masked mean over B.
    num = jnp.sum(num_part, axis=(1, 2))                       # (B,)
    den = jnp.sum(den_part, axis=(1, 2))                       # (B,)
    dice_loss = 1.0 - 2.0 * num / (den + jnp.float32(smooth))  # (B,)
    valid = t0 != -1.0
    n_valid = jnp.sum(valid.astype(jnp.float32))
    return jnp.sum(jnp.where(valid, dice_loss, 0.0)) / n_valid


def _reference(predict, target, smooth=1.0):
    B = predict.shape[0]
    p = predict.reshape(B, -1).astype(jnp.float32)
    t = target.reshape(B, -1).astype(jnp.float32)
    num = jnp.sum(p * t, axis=1)
    den = jnp.sum(p, axis=1) + jnp.sum(t, axis=1) + smooth
    dl = 1.0 - 2.0 * num / den
    mask = t[:, 0] != -1
    return jnp.sum(jnp.where(mask, dl, 0.0)) / jnp.sum(mask)


if __name__ == "__main__":
    key = jax.random.PRNGKey(0)
    kp, kt = jax.random.split(key)
    B, C, H, W = 2, 4, 16, 16
    predict = jax.nn.sigmoid(jax.random.normal(kp, (B, C, H, W), jnp.float32))
    target = (jax.random.uniform(kt, (B, C, H, W), jnp.float32) > 0.5).astype(
        jnp.float32)

    # f32 streaming path: must match the f32 reference tightly.
    out_f32 = jax.block_until_ready(
        binary_dice_loss(predict, target, smooth=1.0, use_bf16=False))
    ref_f32 = _reference(predict, target, smooth=1.0)
    assert jnp.allclose(out_f32, ref_f32, atol=1e-5, rtol=1e-5), (out_f32, ref_f32)

    # Default bf16 streaming path: compare against a reference computed from
    # the same bf16-quantized inputs (accumulation is f32 in both).
    out_bf16 = jax.block_until_ready(
        binary_dice_loss(predict, target, smooth=1.0, use_bf16=True))
    ref_bf16 = _reference(predict.astype(jnp.bfloat16).astype(jnp.float32),
                          target.astype(jnp.bfloat16).astype(jnp.float32),
                          smooth=1.0)
    assert jnp.allclose(out_bf16, ref_bf16, atol=1e-4, rtol=1e-4), (out_bf16, ref_bf16)

    print("KERNEL_OK")
</pallas_src>

<mosaic_0001>
module attributes {stable_mosaic.version = 11 : i64} {
  func.func @_dice_kernel(%arg0: i32, %arg1: i32, %arg2: memref<1x8x128xf32, #tpu.memory_space<vmem>>, %arg3: memref<1x8x128xf32, #tpu.memory_space<vmem>>, %arg4: memref<1x1x128xf32, #tpu.memory_space<vmem>>, %arg5: memref<1x1x128xf32, #tpu.memory_space<vmem>>, %arg6: memref<8x128xf32, #tpu.memory_space<vmem>>, %arg7: memref<8x128xf32, #tpu.memory_space<vmem>>) attributes {dimension_semantics = [#tpu.dimension_semantics<parallel>, #tpu.dimension_semantics<arbitrary>], iteration_bounds = array<i64: 2, 1>, scalar_prefetch = 0 : i64, scratch_operands = 2 : i64, tpu.core_type = #tpu.core_type<tc>, window_params = [{transform_indices = @transform_0, window_bounds = array<i64: 1, 8, 128>}, {transform_indices = @transform_1, window_bounds = array<i64: 1, 8, 128>}, {transform_indices = @transform_2, window_bounds = array<i64: 1, 1, 128>}, {transform_indices = @transform_3, window_bounds = array<i64: 1, 1, 128>}]} {
    %c0_i32 = arith.constant 0 : i32
    %0 = arith.cmpi eq, %arg1, %c0_i32 : i32
    %1 = arith.extui %0 : i1 to i32
    %c0_i32_0 = arith.constant 0 : i32
    %2 = arith.cmpi ne, %1, %c0_i32_0 : i32
    scf.if %2 {
      %cst = arith.constant 0.000000e+00 : f32
      %18 = vector.broadcast %cst : f32 to vector<8x128xf32>
      %c0_16 = arith.constant 0 : index
      %c0_17 = arith.constant 0 : index
      %19 = vector.load %arg6[%c0_16, %c0_17] : memref<8x128xf32, #tpu.memory_space<vmem>>, vector<8x128xf32>
      tpu.vector_store %arg6[%c0_16, %c0_17], %18 {strides = array<i32>} : memref<8x128xf32, #tpu.memory_space<vmem>>, vector<8x128xf32>,
      %cst_18 = arith.constant 0.000000e+00 : f32
      %20 = vector.broadcast %cst_18 : f32 to vector<8x128xf32>
      %c0_19 = arith.constant 0 : index
      %c0_20 = arith.constant 0 : index
      %21 = vector.load %arg7[%c0_19, %c0_20] : memref<8x128xf32, #tpu.memory_space<vmem>>, vector<8x128xf32>
      tpu.vector_store %arg7[%c0_19, %c0_20], %20 {strides = array<i32>} : memref<8x128xf32, #tpu.memory_space<vmem>>, vector<8x128xf32>,
    } else {
    }
    %c0 = arith.constant 0 : index
    %c0_1 = arith.constant 0 : index
    %c0_2 = arith.constant 0 : index
    %3 = vector.load %arg2[%c0, %c0_1, %c0_2] : memref<1x8x128xf32, #tpu.memory_space<vmem>>, vector<1x8x128xf32>
    %4 = vector.shape_cast %3 : vector<1x8x128xf32> to vector<8x128xf32>
    %c0_3 = arith.constant 0 : index
    %c0_4 = arith.constant 0 : index
    %c0_5 = arith.constant 0 : index
    %5 = vector.load %arg3[%c0_3, %c0_4, %c0_5] : memref<1x8x128xf32, #tpu.memory_space<vmem>>, vector<1x8x128xf32>
    %6 = vector.shape_cast %5 : vector<1x8x128xf32> to vector<8x128xf32>
    %c0_6 = arith.constant 0 : index
    %c0_7 = arith.constant 0 : index
    %7 = vector.load %arg6[%c0_6, %c0_7] : memref<8x128xf32, #tpu.memory_space<vmem>>, vector<8x128xf32>
    %8 = arith.mulf %4, %6 : vector<8x128xf32>
    %9 = arith.addf %7, %8 : vector<8x128xf32>
    %c0_8 = arith.constant 0 : index
    %c0_9 = arith.constant 0 : index
    %10 = vector.load %arg6[%c0_8, %c0_9] : memref<8x128xf32, #tpu.memory_space<vmem>>, vector<8x128xf32>
    tpu.vector_store %arg6[%c0_8, %c0_9], %9 {strides = array<i32>} : memref<8x128xf32, #tpu.memory_space<vmem>>, vector<8x128xf32>,
    %c0_10 = arith.constant 0 : index
    %c0_11 = arith.constant 0 : index
    %11 = vector.load %arg7[%c0_10, %c0_11] : memref<8x128xf32, #tpu.memory_space<vmem>>, vector<8x128xf32>
    %12 = arith.addf %4, %6 : vector<8x128xf32>
    %13 = arith.addf %11, %12 : vector<8x128xf32>
    %c0_12 = arith.constant 0 : index
    %c0_13 = arith.constant 0 : index
    %14 = vector.load %arg7[%c0_12, %c0_13] : memref<8x128xf32, #tpu.memory_space<vmem>>, vector<8x128xf32>
    tpu.vector_store %arg7[%c0_12, %c0_13], %13 {strides = array<i32>} : memref<8x128xf32, #tpu.memory_space<vmem>>, vector<8x128xf32>,
    %c0_i32_14 = arith.constant 0 : i32
    %15 = arith.cmpi eq, %arg1, %c0_i32_14 : i32
    %16 = arith.extui %15 : i1 to i32
    %c0_i32_15 = arith.constant 0 : i32
    %17 = arith.cmpi ne, %16, %c0_i32_15 : i32
    scf.if %17 {
      %c0_16 = arith.constant 0 : index
      %c0_17 = arith.constant 0 : index
      %18 = vector.load %arg6[%c0_16, %c0_17] : memref<8x128xf32, #tpu.memory_space<vmem>>, vector<8x128xf32>
      %cst = arith.constant dense<0.000000e+00> : vector<128xf32>
      %19 = vector.multi_reduction <add>, %18, %cst [0] : vector<8x128xf32> to vector<128xf32>
      %20 = vector.shape_cast %19 : vector<128xf32> to vector<1x128xf32>
      %c0_18 = arith.constant 0 : index
      %c0_19 = arith.constant 0 : index
      %c0_20 = arith.constant 0 : index
      %21 = vector.load %arg4[%c0_18, %c0_19, %c0_20] : memref<1x1x128xf32, #tpu.memory_space<vmem>>, vector<1x1x128xf32>
      %22 = vector.shape_cast %21 : vector<1x1x128xf32> to vector<1x128xf32>
      %23 = vector.shape_cast %20 : vector<1x128xf32> to vector<1x1x128xf32>
      tpu.vector_store %arg4[%c0_18, %c0_19, %c0_20], %23 {strides = array<i32>} : memref<1x1x128xf32, #tpu.memory_space<vmem>>, vector<1x1x128xf32>,
      %c0_21 = arith.constant 0 : index
      %c0_22 = arith.constant 0 : index
      %24 = vector.load %arg7[%c0_21, %c0_22] : memref<8x128xf32, #tpu.memory_space<vmem>>, vector<8x128xf32>
      %cst_23 = arith.constant dense<0.000000e+00> : vector<128xf32>
      %25 = vector.multi_reduction <add>, %24, %cst_23 [0] : vector<8x128xf32> to vector<128xf32>
      %26 = vector.shape_cast %25 : vector<128xf32> to vector<1x128xf32>
      %c0_24 = arith.constant 0 : index
      %c0_25 = arith.constant 0 : index
      %c0_26 = arith.constant 0 : index
      %27 = vector.load %arg5[%c0_24, %c0_25, %c0_26] : memref<1x1x128xf32, #tpu.memory_space<vmem>>, vector<1x1x128xf32>
      %28 = vector.shape_cast %27 : vector<1x1x128xf32> to vector<1x128xf32>
      %29 = vector.shape_cast %26 : vector<1x128xf32> to vector<1x1x128xf32>
      tpu.vector_store %arg5[%c0_24, %c0_25, %c0_26], %29 {strides = array<i32>} : memref<1x1x128xf32, #tpu.memory_space<vmem>>, vector<1x1x128xf32>,
    } else {
    }
    return
  }
  func.func @transform_0(%arg0: i32, %arg1: i32) -> (i32, i32, i32) {
    %c0_i32 = arith.constant 0 : i32
    %c0_i32_0 = arith.constant 0 : i32
    return %arg0, %arg1, %c0_i32 : i32, i32, i32
  }
  func.func @transform_1(%arg0: i32, %arg1: i32) -> (i32, i32, i32) {
    %c0_i32 = arith.constant 0 : i32
    %c0_i32_0 = arith.constant 0 : i32
    return %arg0, %arg1, %c0_i32 : i32, i32, i32
  }
  func.func @transform_2(%arg0: i32, %arg1: i32) -> (i32, i32, i32) {
    %c0_i32 = arith.constant 0 : i32
    %c0_i32_0 = arith.constant 0 : i32
    %c0_i32_1 = arith.constant 0 : i32
    return %arg0, %c0_i32, %c0_i32_0 : i32, i32, i32
  }
  func.func @transform_3(%arg0: i32, %arg1: i32) -> (i32, i32, i32) {
    %c0_i32 = arith.constant 0 : i32
    %c0_i32_0 = arith.constant 0 : i32
    %c0_i32_1 = arith.constant 0 : i32
    return %arg0, %c0_i32, %c0_i32_0 : i32, i32, i32
  }
}

</mosaic_0001>

<llo_original>
// kernel: tpu_custom_call.1
$region0: #{tpu_custom_call.1}
  #allocation0 [shape = 'u32[]', space=smem, size = 0x4, offset = 0x4, fixed_abs, tag = 'smem constant byte address 0x4 - core index']
  #allocation1 [shape = 'u32[144,128]{1,0:T(1,128)}', space=vmem, size = 0x12000, scoped, tag = 'internal scratch']
  #allocation2 [shape = 'f32[8,128]{1,0:T(8,128)}', space=vmem, size = 0x1000, scoped, tag = 'scratch operand']
  #allocation3 [shape = 'f32[8,128]{1,0:T(8,128)}', space=vmem, size = 0x1000, scoped, tag = 'scratch operand']
  %s0 = inlined_call_operand.hbm [shape: f32[2,8,128], index: 0, kind: input, shape index: {}]
  %s1 = inlined_call_operand.hbm [shape: f32[2,8,128], index: 1, kind: input, shape index: {}]
  %s2 = inlined_call_operand.hbm [shape: f32[2,1,128], index: 2, kind: output, shape index: {0}]
  %s3 = inlined_call_operand.hbm [shape: f32[2,1,128], index: 3, kind: output, shape index: {1}]
  %4 = xla_tuple %s2, %s3
  %s5 = sld [smem:[#allocation0]]
  $region65: #{tpu_custom_call.1} parent=0
    _
  %s7 = ssub.s32 1, %s5
  %s8 = scalar_select 0, %s7, %s5
  $region1: #{tpu_custom_call.1} parent=0
    #allocation4 [shape = 'u8[8192]{0}', space=vmem, size = 0x2000, scoped, tag = 'input window, operand 0']
    #allocation5 [shape = 's32[2]{0}', space=sflag, size = 0x8, scoped, tag = 'scoped memory for tpu_custom_call.1']
    #allocation6 [shape = 's32[2]{0}', space=sflag, size = 0x8, scoped, tag = 'scoped memory for tpu_custom_call.1']
    #allocation7 [shape = 'u8[8192]{0}', space=vmem, size = 0x2000, scoped, tag = 'input window, operand 1']
    #allocation8 [shape = 's32[2]{0}', space=sflag, size = 0x8, scoped, tag = 'scoped memory for tpu_custom_call.1']
    #allocation9 [shape = 'u8[1024]{0}', space=vmem, size = 0x400, scoped, tag = 'output window, operand 0']
    #allocation10 [shape = 'u8[1024]{0}', space=vmem, size = 0x400, scoped, tag = 'output window, operand 1']
    #allocation11 [shape = 's32[2]{0}', space=sflag, size = 0x8, scoped, tag = 'scoped memory for tpu_custom_call.1']
    %9 = vsyncpa [#allocation5], 0
    %s10 = scalar_lea.sflag [#allocation5], 1
    %11 = vsyncpa %s10, 0
    %12 = vsyncpa [#allocation8], 0
    %s13 = scalar_lea.sflag [#allocation8], 1
    %14 = vsyncpa %s13, 0
    %15 = vsyncpa [#allocation6], 0
    %s16 = scalar_lea.sflag [#allocation6], 1
    %17 = vsyncpa %s16, 0
    %18 = vsyncpa [#allocation11], 0
    %s19 = scalar_lea.sflag [#allocation11], 1
    %20 = vsyncpa %s19, 0
    loop: start=0, step=1, limit=4
    $region2: #{tpu_custom_call.1} parent=1 // loop_pre_header
      _
    $region3: #{tpu_custom_call.1} parent=1 // loop_header
      %s22 = sphi 0, %s26
      %p23 = scmp.ge.s32.totalorder %s22, 4
      %s29 = sphi 0, %s41
      %s30 = sphi 0, %s37
      %s31 = sphi 0, %s29
      %s32 = sphi 0, %s30
      %s33 = sphi 0, %s31
      %s34 = sphi 0, %s32
      %s46 = sphi 0, %s48
      %s49 = sphi 0, %s46
      %s50 = sphi 0, %s49
      %s66 = sphi 0, %s50
      %s74 = sphi 0, %s76
      %s77 = sphi 0, %s74
      %s78 = sphi 0, %s77
      %s94 = sphi 0, %s78
      %s100 = sphi 0, %s102
      %s103 = sphi 0, %s100
      %s104 = sphi 0, %s103
      %s120 = sphi 0, %s104
      %s126 = sphi 0, %s128
      %s129 = sphi 0, %s126
      %s130 = sphi 0, %s129
      %s146 = sphi 0, %s130
    $region4: #{tpu_custom_call.1} parent=1 // loop_header_branch
      %25 = sbr.rel (%p23) target = $region8
    $region5: #{tpu_custom_call.1} parent=1 // loop_body
      %s27 = ssub.s32 %s22, 1
      %s28 = ssub.s32 %s22, 2
      %s35 = sadd.s32 1, %s30
      %p36 = scmp.ge.s32.totalorder %s35, 1
      %s37 = scalar_select %p36, 0, %s35
      %s38 = sadd.s32 1, %s29
      %s39 = scalar_select %p36, %s38, %s29
      %p40 = scmp.ge.s32.totalorder %s39, 2
      %s41 = scalar_select %p40, 0, %s39
      %s42 = ssub.s32 %s29, %s41
      %s43 = ssub.s32 %s30, %s37
      %s44 = sor.u32 %s42, %s43
      %p45 = scmp.eq.s32.totalorder %s44, 0
      %s47 = sadd.s32 %s46, 1
      %s48 = scalar_select %p45, %s46, %s47
      %p51 = pneg %p45
      %p52 = scmp.eq.s32.totalorder %s22, 1
      %p53 = por %p51, %p52
      %p54 = scmp.ne.s32.totalorder %s46, %s49
      %p55 = scmp.eq.s32.totalorder %s22, 0
      %p56 = por %p54, %p55
      %p57 = scmp.ne.s32.totalorder %s46, %s49
      %p58 = scmp.eq.s32.totalorder %s27, 1
      %p59 = por %p57, %p58
      %p60 = scmp.ne.s32.totalorder %s49, %s50
      %p61 = scmp.eq.s32.totalorder %s27, 0
      %p62 = por %p60, %p61
      %p63 = scmp.ne.s32.totalorder %s49, %s50
      %p64 = scmp.eq.s32.totalorder %s28, 1
      %p65 = por %p63, %p64
      %p67 = scmp.ne.s32.totalorder %s50, %s66
      %p68 = scmp.eq.s32.totalorder %s28, 0
      %p69 = por %p67, %p68
      %s70 = ssub.s32 %s29, %s41
      %s71 = ssub.s32 %s30, %s37
      %s72 = sor.u32 %s70, %s71
      %p73 = scmp.eq.s32.totalorder %s72, 0
      %s75 = sadd.s32 %s74, 1
      %s76 = scalar_select %p73, %s74, %s75
      %p79 = pneg %p73
      %p80 = scmp.eq.s32.totalorder %s22, 1
      %p81 = por %p79, %p80
      %p82 = scmp.ne.s32.totalorder %s74, %s77
      %p83 = scmp.eq.s32.totalorder %s22, 0
      %p84 = por %p82, %p83
      %p85 = scmp.ne.s32.totalorder %s74, %s77
      %p86 = scmp.eq.s32.totalorder %s27, 1
      %p87 = por %p85, %p86
      %p88 = scmp.ne.s32.totalorder %s77, %s78
      %p89 = scmp.eq.s32.totalorder %s27, 0
      %p90 = por %p88, %p89
      %p91 = scmp.ne.s32.totalorder %s77, %s78
      %p92 = scmp.eq.s32.totalorder %s28, 1
      %p93 = por %p91, %p92
      %p95 = scmp.ne.s32.totalorder %s78, %s94
      %p96 = scmp.eq.s32.totalorder %s28, 0
      %p97 = por %p95, %p96
      %s98 = ssub.s32 %s29, %s41
      %p99 = scmp.eq.s32.totalorder %s98, 0
      %s101 = sadd.s32 %s100, 1
      %s102 = scalar_select %p99, %s100, %s101
      %p105 = pneg %p99
      %p106 = scmp.eq.s32.totalorder %s22, 1
      %p107 = por %p105, %p106
      %p108 = scmp.ne.s32.totalorder %s100, %s103
      %p109 = scmp.eq.s32.totalorder %s22, 0
      %p110 = por %p108, %p109
      %p111 = scmp.ne.s32.totalorder %s100, %s103
      %p112 = scmp.eq.s32.totalorder %s27, 1
      %p113 = por %p111, %p112
      %p114 = scmp.ne.s32.totalorder %s103, %s104
      %p115 = scmp.eq.s32.totalorder %s27, 0
      %p116 = por %p114, %p115
      %p117 = scmp.ne.s32.totalorder %s103, %s104
      %p118 = scmp.eq.s32.totalorder %s28, 1
      %p119 = por %p117, %p118
      %p121 = scmp.ne.s32.totalorder %s104, %s120
      %p122 = scmp.eq.s32.totalorder %s28, 0
      %p123 = por %p121, %p122
      %s124 = ssub.s32 %s29, %s41
      %p125 = scmp.eq.s32.totalorder %s124, 0
      %s127 = sadd.s32 %s126, 1
      %s128 = scalar_select %p125, %s126, %s127
      %p131 = pneg %p125
      %p132 = scmp.eq.s32.totalorder %s22, 1
      %p133 = por %p131, %p132
      %p134 = scmp.ne.s32.totalorder %s126, %s129
      %p135 = scmp.eq.s32.totalorder %s22, 0
      %p136 = por %p134, %p135
      %p137 = scmp.ne.s32.totalorder %s126, %s129
      %p138 = scmp.eq.s32.totalorder %s27, 1
      %p139 = por %p137, %p138
      %p140 = scmp.ne.s32.totalorder %s129, %s130
      %p141 = scmp.eq.s32.totalorder %s27, 0
      %p142 = por %p140, %p141
      %p143 = scmp.ne.s32.totalorder %s129, %s130
      %p144 = scmp.eq.s32.totalorder %s28, 1
      %p145 = por %p143, %p144
      %p147 = scmp.ne.s32.totalorder %s130, %s146
      %p148 = scmp.eq.s32.totalorder %s28, 0
      %p149 = por %p147, %p148
      %p150 = scmp.le.s32.totalorder 1, %s22
      %p151 = scmp.lt.s32.totalorder %s22, 3
      %p152 = pnand %p150, %p151
      %p153 = pneg %p152
      // Predicated region
      $region9: #{tpu_custom_call.1} parent=5 // pred_check
        _
      $region10: #{tpu_custom_call.1} parent=5 // pred_check_branch
        %155 = sbr.rel (%p152) target = $region12
      $region11: #{tpu_custom_call.1} parent=5 // pred_region
        %s156 = ssub.s32 %s22, 1
      $region12: #{tpu_custom_call.1} parent=5 // pred_fallthru
        _
      %p157 = scmp.lt.s32.totalorder %s22, 2
      // Predicated region
      $region13: #{tpu_custom_call.1} parent=5 // pred_check
        %p158 = pneg %p157
      $region14: #{tpu_custom_call.1} parent=5 // pred_check_branch
        %160 = sbr.rel (%p158) target = $region16
      $region15: #{tpu_custom_call.1} parent=5 // pred_region
        // Predicated region
        $region17: #{tpu_custom_call.1} parent=15 // pred_check
          %p161 = pneg %p56
        $region18: #{tpu_custom_call.1} parent=15 // pred_check_branch
          %163 = sbr.rel (%p161) target = $region20
        $region19: #{tpu_custom_call.1} parent=15 // pred_region
          %s164 = sand.u32 %s46, 1
          %s165 = scalar_lea.sflag [#allocation5], %s164
          %s166 = sand.u32 %s46, 1
          %s167 = smul.addr %s166, 8
          %s168 = scalar_lea.vmem [#allocation4], %s167
          %s170 = ssub.s32 128, 128
          %171 = vsyncadd %s165, %s170
          %s172 = sadd.s32 %s30, %s29
          %s173 = smul.addr %s172, 128
          %s174 = scalar_lea.hbm %s0, %s173
          %s176 = sshll.u32 %s168, 4
          %s177 = int_to_ptr.vmem [resolvable:$true] %s176
          %179 = dma.hbm_to_vmem [thread:$0]  %s174, 128, %s177, %s165
        $region20: #{tpu_custom_call.1} parent=15 // pred_fallthru
          _
        // Predicated region
        $region21: #{tpu_custom_call.1} parent=15 // pred_check
          %p180 = pneg %p84
        $region22: #{tpu_custom_call.1} parent=15 // pred_check_branch
          %182 = sbr.rel (%p180) target = $region24
        $region23: #{tpu_custom_call.1} parent=15 // pred_region
          %s183 = sand.u32 %s74, 1
          %s184 = scalar_lea.sflag [#allocation8], %s183
          %s185 = sand.u32 %s74, 1
          %s186 = smul.addr %s185, 8
          %s187 = scalar_lea.vmem [#allocation7], %s186
          %s189 = ssub.s32 128, 128
          %190 = vsyncadd %s184, %s189
          %s191 = sadd.s32 %s30, %s29
          %s192 = smul.addr %s191, 128
          %s193 = scalar_lea.hbm %s1, %s192
          %s195 = sshll.u32 %s187, 4
          %s196 = int_to_ptr.vmem [resolvable:$true] %s195
          %198 = dma.hbm_to_vmem [thread:$0]  %s193, 128, %s196, %s184
        $region24: #{tpu_custom_call.1} parent=15 // pred_fallthru
          _
      $region16: #{tpu_custom_call.1} parent=5 // pred_fallthru
        _
      %p199 = scmp.le.s32.totalorder 1, %s22
      %p200 = scmp.lt.s32.totalorder %s22, 3
      %p201 = pnand %p199, %p200
      %p202 = pneg %p201
      // Predicated region
      $region25: #{tpu_custom_call.1} parent=5 // pred_check
        _
      $region26: #{tpu_custom_call.1} parent=5 // pred_check_branch
        %204 = sbr.rel (%p201) target = $region28
      $region27: #{tpu_custom_call.1} parent=5 // pred_region
        %s205 = ssub.s32 %s22, 1
        %s206 = sand.u32 %s49, 1
        %s207 = scalar_lea.sflag [#allocation5], %s206
        %s208 = sand.u32 %s49, 1
        %s209 = smul.addr %s208, 8
        %s210 = scalar_lea.vmem [#allocation4], %s209
        // Predicated region
        $region29: #{tpu_custom_call.1} parent=27 // pred_check
          %p211 = pneg %p62
        $region30: #{tpu_custom_call.1} parent=27 // pred_check_branch
          %213 = sbr.rel (%p211) target = $region32
        $region31: #{tpu_custom_call.1} parent=27 // pred_region
          %214 = dma.done %s207, 128
        $region32: #{tpu_custom_call.1} parent=27 // pred_fallthru
          _
        %s215 = sand.u32 %s77, 1
        %s216 = scalar_lea.sflag [#allocation8], %s215
        %s217 = sand.u32 %s77, 1
        %s218 = smul.addr %s217, 8
        %s219 = scalar_lea.vmem [#allocation7], %s218
        // Predicated region
        $region33: #{tpu_custom_call.1} parent=27 // pred_check
          %p220 = pneg %p90
        $region34: #{tpu_custom_call.1} parent=27 // pred_check_branch
          %222 = sbr.rel (%p220) target = $region36
        $region35: #{tpu_custom_call.1} parent=27 // pred_region
          %223 = dma.done %s216, 128
        $region36: #{tpu_custom_call.1} parent=27 // pred_fallthru
          _
        %s224 = sand.u32 %s49, 1
        %s225 = scalar_lea.sflag [#allocation5], %s224
        %s226 = sand.u32 %s49, 1
        %s227 = smul.addr %s226, 8
        %s228 = scalar_lea.vmem [#allocation4], %s227
        %p229 = pneg %p62
        %p230 = pneg %p59
        %s231 = sand.u32 %s77, 1
        %s232 = scalar_lea.sflag [#allocation8], %s231
        %s233 = sand.u32 %s77, 1
        %s234 = smul.addr %s233, 8
        %s235 = scalar_lea.vmem [#allocation7], %s234
        %p236 = pneg %p90
        %p237 = pneg %p87
        %p238 = pneg %p116
        %p239 = pneg %p113
        %s240 = sand.u32 %s103, 1
        %s241 = scalar_lea.sflag [#allocation6], %s240
        %s242 = sand.u32 %s103, 1
        %s243 = scalar_lea.vmem [#allocation9], %s242
        %p244 = pneg %p142
        %p245 = pneg %p139
        %s246 = sand.u32 %s129, 1
        %s247 = scalar_lea.sflag [#allocation11], %s246
        %s248 = sand.u32 %s129, 1
        %s249 = scalar_lea.vmem [#allocation10], %s248
        %p250 = scmp.eq.s32.totalorder %s32, 0
        // Predicated region
        $region37: #{tpu_custom_call.1} parent=27 // pred_check
          %p251 = pneg %p250
        $region38: #{tpu_custom_call.1} parent=27 // pred_check_branch
          %253 = sbr.rel (%p251) target = $region40
        $region39: #{tpu_custom_call.1} parent=27 // pred_region
          %254 = vst [vmem:[#allocation2] sm:$0xff] 0.0
          %255 = vst [vmem:[#allocation3] sm:$0xff] 0.0
        $region40: #{tpu_custom_call.1} parent=27 // pred_fallthru
          _
        %v256 = vld [vmem:[%s210] sm:$0xff]
        %v257 = vld [vmem:[%s219] sm:$0xff]
        %v258 = vld [vmem:[#allocation2] sm:$0xff]
        %v259 = vmul.f32 %v256, %v257
        %v260 = vadd.f32 %v258, %v259
        %261 = vst [vmem:[#allocation2] sm:$0xff] %v260
        %v262 = vld [vmem:[#allocation3] sm:$0xff]
        %v263 = vadd.f32 %v256, %v257
        %v264 = vadd.f32 %v262, %v263
        %265 = vst [vmem:[#allocation3] sm:$0xff] %v264
        // Predicated region
        $region41: #{tpu_custom_call.1} parent=27 // pred_check
          %p266 = pneg %p250
        $region42: #{tpu_custom_call.1} parent=27 // pred_check_branch
          %268 = sbr.rel (%p266) target = $region44
        $region43: #{tpu_custom_call.1} parent=27 // pred_region
          %v269 = vld [vmem:[#allocation2] sm:$0xff]
          %v270 = vrot.slane %v269, 4
          %v271 = vadd.f32 %v269, %v270
          %v272 = vrot.slane %v271, 2
          %v273 = vadd.f32 %v271, %v272
          %v274 = vrot.slane %v273, 1
          %v275 = vadd.f32 %v273, %v274
          %276 = vst [vmem:[%s243] sm:$0x1] %v275
          %v277 = vld [vmem:[#allocation3] sm:$0xff]
          %v278 = vrot.slane %v277, 4
          %v279 = vadd.f32 %v277, %v278
          %v280 = vrot.slane %v279, 2
          %v281 = vadd.f32 %v279, %v280
          %v282 = vrot.slane %v281, 1
          %v283 = vadd.f32 %v281, %v282
          %284 = vst [vmem:[%s249] sm:$0x1] %v283
        $region44: #{tpu_custom_call.1} parent=27 // pred_fallthru
          _
        %s285 = sand.u32 %s103, 1
        %s286 = scalar_lea.sflag [#allocation6], %s285
        %s287 = sand.u32 %s103, 1
        %s288 = scalar_lea.vmem [#allocation9], %s287
        %s289 = sand.u32 %s129, 1
        %s290 = scalar_lea.sflag [#allocation11], %s289
        %s291 = sand.u32 %s129, 1
        %s292 = scalar_lea.vmem [#allocation10], %s291
        // Predicated region
        $region45: #{tpu_custom_call.1} parent=27 // pred_check
          %p293 = pneg %p113
        $region46: #{tpu_custom_call.1} parent=27 // pred_check_branch
          %295 = sbr.rel (%p293) target = $region48
        $region47: #{tpu_custom_call.1} parent=27 // pred_region
          %s297 = ssub.s32 16, 16
          %298 = vsyncadd %s286, %s297
          %s299 = smul.addr %s31, 16
          %s300 = scalar_lea.hbm %s2, %s299
          %s302 = sshll.u32 %s288, 4
          %s303 = int_to_ptr.vmem [resolvable:$true] %s302
          %305 = dma.vmem_to_hbm [thread:$0]  %s303, 16, %s300, %s286
        $region48: #{tpu_custom_call.1} parent=27 // pred_fallthru
          _
        // Predicated region
        $region49: #{tpu_custom_call.1} parent=27 // pred_check
          %p306 = pneg %p139
        $region50: #{tpu_custom_call.1} parent=27 // pred_check_branch
          %308 = sbr.rel (%p306) target = $region52
        $region51: #{tpu_custom_call.1} parent=27 // pred_region
          %s310 = ssub.s32 16, 16
          %311 = vsyncadd %s290, %s310
          %s312 = smul.addr %s31, 16
          %s313 = scalar_lea.hbm %s3, %s312
          %s315 = sshll.u32 %s292, 4
          %s316 = int_to_ptr.vmem [resolvable:$true] %s315
          %318 = dma.vmem_to_hbm [thread:$0]  %s316, 16, %s313, %s290
        $region52: #{tpu_custom_call.1} parent=27 // pred_fallthru
          _
      $region28: #{tpu_custom_call.1} parent=5 // pred_fallthru
        _
      %p319 = scmp.le.s32.totalorder 2, %s22
      // Predicated region
      $region53: #{tpu_custom_call.1} parent=5 // pred_check
        %p320 = pneg %p319
      $region54: #{tpu_custom_call.1} parent=5 // pred_check_branch
        %322 = sbr.rel (%p320) target = $region56
      $region55: #{tpu_custom_call.1} parent=5 // pred_region
        %s323 = ssub.s32 %s22, 2
        // Predicated region
        $region57: #{tpu_custom_call.1} parent=55 // pred_check
          %p324 = pneg %p119
        $region58: #{tpu_custom_call.1} parent=55 // pred_check_branch
          %326 = sbr.rel (%p324) target = $region60
        $region59: #{tpu_custom_call.1} parent=55 // pred_region
          %s327 = sand.u32 %s104, 1
          %s328 = scalar_lea.sflag [#allocation6], %s327
          %s329 = sand.u32 %s104, 1
          %s330 = scalar_lea.vmem [#allocation9], %s329
          %331 = dma.done %s328, 16
        $region60: #{tpu_custom_call.1} parent=55 // pred_fallthru
          _
        // Predicated region
        $region61: #{tpu_custom_call.1} parent=55 // pred_check
          %p332 = pneg %p145
        $region62: #{tpu_custom_call.1} parent=55 // pred_check_branch
          %334 = sbr.rel (%p332) target = $region64
        $region63: #{tpu_custom_call.1} parent=55 // pred_region
          %s335 = sand.u32 %s130, 1
          %s336 = scalar_lea.sflag [#allocation11], %s335
          %s337 = sand.u32 %s130, 1
          %s338 = scalar_lea.vmem [#allocation10], %s337
          %339 = dma.done %s336, 16
        $region64: #{tpu_custom_call.1} parent=55 // pred_fallthru
          _
      $region56: #{tpu_custom_call.1} parent=5 // pred_fallthru
        _
    $region6: #{tpu_custom_call.1} parent=1 // loop_footer
      %s26 = sadd.s32 1, %s22
    $region7: #{tpu_custom_call.1} parent=1 // loop_footer_branch
      %21 = sbr.rel target = $region3
    $region8: #{tpu_custom_call.1} parent=1 // loop_exit
      _
    %340 = vsyncpa [#allocation5], 1
    %s341 = scalar_lea.sflag [#allocation5], 1
    %342 = vsyncpa %s341, 1
    %343 = vsyncpa [#allocation8], 1
    %s344 = scalar_lea.sflag [#allocation8], 1
    %345 = vsyncpa %s344, 1
    %346 = vsyncpa [#allocation6], 1
    %s347 = scalar_lea.sflag [#allocation6], 1
    %348 = vsyncpa %s347, 1
    %349 = vsyncpa [#allocation11], 1
    %s350 = scalar_lea.sflag [#allocation11], 1
    %351 = vsyncpa %s350, 1

</llo_original>
